<compile_context>
chip_gen: v7x
topology: tpu7x:2x2x1
jax: 0.10.0
libtpu: 0.0.40
codegen_flags: <defaults>
</compile_context>

<pallas_src>
import functools

import jax
import jax.numpy as jnp
from jax import lax
from jax.experimental import pallas as pl
from jax.experimental.pallas import tpu as pltpu


def _round_up(x, m):
    return ((x + m - 1) // m) * m


def _flow_chain_kernel(z_ref, b_ref, w_ref, u_ref, z_out_ref, ladj_out_ref,
                       z_acc, ladj_acc, *, k_tile, unroll):
    """One (batch-block, K-tile) grid step of the planar-flow chain.

    Lane-dense transposed layout: batch is the last (lane) axis.
      z_ref:        (D, TB)        initial latents for this batch block
      b_ref:        (TK, 1, TB)    biases of the TK flows in this K tile
      w_ref, u_ref: (TK, D, TB)    w / u vectors of the TK flows
      z_out_ref:    (D, TB)
      ladj_out_ref: (1, TB)
      z_acc:        (D, TB) f32 scratch  -- carried latents
      ladj_acc:     (1, TB) f32 scratch  -- accumulated log|det J|
    """
    kt = pl.program_id(1)

    @pl.when(kt == 0)
    def _():
        z_acc[...] = z_ref[...].astype(jnp.float32)
        ladj_acc[...] = jnp.zeros(ladj_acc.shape, jnp.float32)

    def body(j, carry):
        b = b_ref[j].astype(jnp.float32)              # (1, TB)
        w = w_ref[j].astype(jnp.float32)              # (D, TB)
        u = u_ref[j].astype(jnp.float32)              # (D, TB)
        z = z_acc[...]                                # (D, TB)

        # w·u is independent of z -> issues ahead of the tanh dependency chain.
        wu = jnp.sum(w * u, axis=0, keepdims=True)    # (1, TB)

        zw = jnp.sum(z * w, axis=0, keepdims=True)    # (1, TB)
        t = jnp.tanh(zw + b)                          # (1, TB)

        # f(z) = z + u * tanh(z·w + b)
        z_acc[...] = z + u * t

        # psi·u == (1 - t^2) * (w·u): no psi materialization, one reduction saved.
        ladj_acc[...] = ladj_acc[...] + jnp.log(jnp.abs(1.0 + (1.0 - t * t) * wu))
        return carry

    lax.fori_loop(0, k_tile, body, 0, unroll=unroll)

    @pl.when(kt == pl.num_programs(1) - 1)
    def _():
        z_out_ref[...] = z_acc[...].astype(z_out_ref.dtype)
        ladj_out_ref[...] = ladj_acc[...].astype(ladj_out_ref.dtype)


def _vmem_bytes_est(block_b, k_tile, D, param_itemsize=4):
    """Layout-padded VMEM estimate: lanes padded to 128, sublanes to 8."""
    Dp = _round_up(max(int(D), 1), 8)
    r1 = 8                      # a 1-row buffer still occupies 8 sublanes
    f32 = 4
    # double-buffered pipelined inputs
    inputs = 2 * block_b * (Dp * f32                          # z in (f32)
                            + k_tile * r1 * param_itemsize    # b
                            + 2 * k_tile * Dp * param_itemsize)  # w, u
    # double-buffered outputs
    outputs = 2 * block_b * (Dp + r1) * f32
    # single-buffered scratch accumulators
    scratch = block_b * (Dp + r1) * f32
    return inputs + outputs + scratch


def _pick_tiles(B, K, D, budget, param_itemsize, block_b=None):
    Bp128 = _round_up(B, 128)
    if block_b is None:
        desired = min(Bp128, 8192)
        # Keep >= 2 batch blocks when the batch is big enough, so the
        # "parallel" axis can shard across both v7x TensorCores.
        if Bp128 >= 256:
            desired = min(desired, _round_up((Bp128 + 1) // 2, 128))
        desired = max(desired, 128)
    else:
        desired = max(128, _round_up(int(block_b), 128))

    bb = desired
    while True:
        kt = max(1, int(K))
        while kt > 1 and _vmem_bytes_est(bb, kt, D, param_itemsize) > budget:
            kt = (kt + 1) // 2
        if _vmem_bytes_est(bb, kt, D, param_itemsize) <= budget or bb == 128:
            return bb, kt
        bb = max(128, bb // 2)


def normalizing_flow(z, flow_params, *, block_b=None, params_dtype=None):
    """Chain of K planar flows.

    z:           (B, D)
    flow_params: (K, B, 1 + 2*D), laid out [b | w | u] per flow.
    params_dtype: optional storage dtype for the streamed parameters
        (e.g. jnp.bfloat16 on v6e/v7x to halve HBM traffic).  Compute is
        always f32; default None keeps exact f32 parity with the reference.

    Returns (z_K, sum log|det J|) with shapes (B, D) and (B, 1, 1).
    """
    K, B, P = flow_params.shape
    Bz, D = z.shape
    assert Bz == B and P == 1 + 2 * D

    # Generation-aware VMEM budget (v7x has only 64 MiB per TensorCore).
    try:
        vmem_cap = int(pltpu.get_tpu_info().vmem_capacity_bytes)
    except Exception:
        vmem_cap = 64 << 20
    budget = min(vmem_cap // 2, 32 << 20)

    param_itemsize = jnp.dtype(params_dtype or flow_params.dtype).itemsize
    block_b, k_tile = _pick_tiles(B, K, D, budget, param_itemsize, block_b)

    Bp = _round_up(B, block_b)
    Kp = _round_up(K, k_tile)

    # Wrapper-side layout plumbing: split [b|w|u] and put batch on the lane
    # axis.  Zero padding is exact: padded rows/flows contribute u*t == 0 and
    # log|1 + 0| == 0, so no NaNs and no effect on real rows.
    b_t = jnp.transpose(flow_params[:, :, 0:1], (0, 2, 1))         # (K, 1, B)
    w_t = jnp.transpose(flow_params[:, :, 1:1 + D], (0, 2, 1))     # (K, D, B)
    u_t = jnp.transpose(flow_params[:, :, 1 + D:], (0, 2, 1))      # (K, D, B)
    z_t = z.T                                                      # (D, B)

    if params_dtype is not None:
        b_t = b_t.astype(params_dtype)
        w_t = w_t.astype(params_dtype)
        u_t = u_t.astype(params_dtype)

    if Bp != B:
        pad_b = ((0, 0), (0, 0), (0, Bp - B))
        b_t = jnp.pad(b_t, pad_b)
        w_t = jnp.pad(w_t, pad_b)
        u_t = jnp.pad(u_t, pad_b)
        z_t = jnp.pad(z_t, ((0, 0), (0, Bp - B)))
    if Kp != K:
        pad_k = ((0, Kp - K), (0, 0), (0, 0))
        b_t = jnp.pad(b_t, pad_k)
        w_t = jnp.pad(w_t, pad_k)
        u_t = jnp.pad(u_t, pad_k)

    grid = (Bp // block_b, Kp // k_tile)

    est = _vmem_bytes_est(block_b, k_tile, D, param_itemsize)
    vmem_limit = int(min(vmem_cap - (16 << 20),
                         max(24 << 20, int(est * 1.3) + (4 << 20))))

    z_out_t, ladj = pl.pallas_call(
        functools.partial(_flow_chain_kernel, k_tile=k_tile,
                          unroll=(k_tile <= 8)),
        grid=grid,
        in_specs=[
            pl.BlockSpec((D, block_b), lambda i, kt: (0, i)),
            pl.BlockSpec((k_tile, 1, block_b), lambda i, kt: (kt, 0, i)),
            pl.BlockSpec((k_tile, D, block_b), lambda i, kt: (kt, 0, i)),
            pl.BlockSpec((k_tile, D, block_b), lambda i, kt: (kt, 0, i)),
        ],
        out_specs=(
            pl.BlockSpec((D, block_b), lambda i, kt: (0, i)),
            pl.BlockSpec((1, block_b), lambda i, kt: (0, i)),
        ),
        out_shape=(
            jax.ShapeDtypeStruct((D, Bp), z.dtype),
            jax.ShapeDtypeStruct((1, Bp), jnp.float32),
        ),
        scratch_shapes=[
            pltpu.VMEM((D, block_b), jnp.float32),
            pltpu.VMEM((1, block_b), jnp.float32),
        ],
        compiler_params=pltpu.CompilerParams(
            dimension_semantics=("parallel", "arbitrary"),
            vmem_limit_bytes=vmem_limit,
        ),
    )(z_t, b_t, w_t, u_t)

    # Back to the PyTorch module's shapes: (B, D) and (B, 1, 1) (bmm result).
    z_out = z_out_t[:, :B].T
    sum_ladj = ladj[0, :B].reshape(B, 1, 1)
    return z_out, sum_ladj


def planar_flow(z, lamda, *, block_b=None, params_dtype=None):
    """Single PlanarFlow.forward: z (B, D), lamda (B, 1+2D) -> (f_z, ladj (B,1,1))."""
    return normalizing_flow(z, lamda[None], block_b=block_b,
                            params_dtype=params_dtype)


# ----------------------------- pure-JAX references -----------------------------

def _planar_flow_ref(z, lamda):
    D = z.shape[1]
    b = lamda[:, :1]
    w = lamda[:, 1:1 + D]
    u = lamda[:, 1 + D:]
    transf = jnp.tanh(jnp.sum(z * w, axis=-1, keepdims=True) + b)
    f_z = z + u * transf
    psi = (1.0 - transf ** 2) * w
    ladj = jnp.log(jnp.abs(1.0 + jnp.sum(psi * u, axis=-1, keepdims=True)))
    return f_z, ladj[:, :, None]


def _normalizing_flow_ref(z, flow_params):
    K = flow_params.shape[0]
    B = z.shape[0]
    sum_ladj = jnp.zeros((B, 1, 1), jnp.float32)
    for i in range(K):
        z, ladj = _planar_flow_ref(z, flow_params[i])
        sum_ladj = sum_ladj + ladj
    return z, sum_ladj


if __name__ == "__main__":
    key = jax.random.PRNGKey(0)
    k1, k2, k3, k4 = jax.random.split(key, 4)

    # --- Single PlanarFlow (exactly the PyTorch module's forward) ---
    B, D = 8, 32
    z = jax.random.normal(k1, (B, D), dtype=jnp.float32)
    lamda = 0.1 * jax.random.normal(k2, (B, 1 + 2 * D), dtype=jnp.float32)

    f_z, ladj = planar_flow(z, lamda)
    jax.block_until_ready((f_z, ladj))

    f_ref, l_ref = _planar_flow_ref(z, lamda)
    assert f_z.shape == (B, D) and ladj.shape == (B, 1, 1)
    assert jnp.allclose(f_z, f_ref, atol=1e-5, rtol=1e-5)
    assert jnp.allclose(ladj, l_ref, atol=1e-5, rtol=1e-5)

    # --- Stacked chain (K flows): exercises the fused K tile, scratch
    #     carry/accumulate, and the batch-padding path (B=12 -> 128 lanes). ---
    K, B2, D2 = 3, 12, 32
    z2 = jax.random.normal(k3, (B2, D2), dtype=jnp.float32)
    fp = 0.1 * jax.random.normal(k4, (K, B2, 1 + 2 * D2), dtype=jnp.float32)

    z_out, sum_ladj = normalizing_flow(z2, fp)
    jax.block_until_ready((z_out, sum_ladj))

    z_ref, sl_ref = _normalizing_flow_ref(z2, fp)
    assert z_out.shape == (B2, D2) and sum_ladj.shape == (B2, 1, 1)
    assert jnp.allclose(z_out, z_ref, atol=1e-5, rtol=1e-5)
    assert jnp.allclose(sum_ladj, sl_ref, atol=1e-5, rtol=1e-5)

    print("KERNEL_OK")
</pallas_src>

<mosaic_0001>
module attributes {stable_mosaic.version = 11 : i64} {
  func.func @_flow_chain_kernel(%arg0: i32, %arg1: i32, %arg2: memref<32x128xf32, #tpu.memory_space<vmem>>, %arg3: memref<1x1x128xf32, #tpu.memory_space<vmem>>, %arg4: memref<1x32x128xf32, #tpu.memory_space<vmem>>, %arg5: memref<1x32x128xf32, #tpu.memory_space<vmem>>, %arg6: memref<32x128xf32, #tpu.memory_space<vmem>>, %arg7: memref<1x128xf32, #tpu.memory_space<vmem>>, %arg8: memref<32x128xf32, #tpu.memory_space<vmem>>, %arg9: memref<1x128xf32, #tpu.memory_space<vmem>>) attributes {dimension_semantics = [#tpu.dimension_semantics<parallel>, #tpu.dimension_semantics<arbitrary>], iteration_bounds = array<i64: 1, 1>, scalar_prefetch = 0 : i64, scratch_operands = 2 : i64, tpu.core_type = #tpu.core_type<tc>, window_params = [{transform_indices = @transform_0, window_bounds = array<i64: 32, 128>}, {transform_indices = @transform_1, window_bounds = array<i64: 1, 1, 128>}, {transform_indices = @transform_2, window_bounds = array<i64: 1, 32, 128>}, {transform_indices = @transform_3, window_bounds = array<i64: 1, 32, 128>}, {transform_indices = @transform_4, window_bounds = array<i64: 32, 128>}, {transform_indices = @transform_5, window_bounds = array<i64: 1, 128>}]} {
    %c0_i32 = arith.constant 0 : i32
    %0 = arith.cmpi eq, %arg1, %c0_i32 : i32
    %1 = arith.extui %0 : i1 to i32
    %c0_i32_0 = arith.constant 0 : i32
    %2 = arith.cmpi ne, %1, %c0_i32_0 : i32
    scf.if %2 {
      %c0_20 = arith.constant 0 : index
      %c0_21 = arith.constant 0 : index
      %39 = vector.load %arg2[%c0_20, %c0_21] : memref<32x128xf32, #tpu.memory_space<vmem>>, vector<32x128xf32>
      %c0_22 = arith.constant 0 : index
      %c0_23 = arith.constant 0 : index
      %40 = vector.load %arg8[%c0_22, %c0_23] : memref<32x128xf32, #tpu.memory_space<vmem>>, vector<32x128xf32>
      tpu.vector_store %arg8[%c0_22, %c0_23], %39 {strides = array<i32>} : memref<32x128xf32, #tpu.memory_space<vmem>>, vector<32x128xf32>,
      %cst_24 = arith.constant 0.000000e+00 : f32
      %41 = vector.broadcast %cst_24 : f32 to vector<1x128xf32>
      %c0_25 = arith.constant 0 : index
      %c0_26 = arith.constant 0 : index
      %42 = vector.load %arg9[%c0_25, %c0_26] : memref<1x128xf32, #tpu.memory_space<vmem>>, vector<1x128xf32>
      tpu.vector_store %arg9[%c0_25, %c0_26], %41 {strides = array<i32>} : memref<1x128xf32, #tpu.memory_space<vmem>>, vector<1x128xf32>,
    } else {
    }
    %c0_i32_1 = arith.constant 0 : i32
    %3 = arith.index_cast %c0_i32_1 : i32 to index
    %c0 = arith.constant 0 : index
    %c0_2 = arith.constant 0 : index
    %4 = vector.load %arg3[%3, %c0, %c0_2] : memref<1x1x128xf32, #tpu.memory_space<vmem>>, vector<1x1x128xf32>
    %5 = vector.shape_cast %4 : vector<1x1x128xf32> to vector<1x128xf32>
    %6 = arith.index_cast %c0_i32_1 : i32 to index
    %c0_3 = arith.constant 0 : index
    %c0_4 = arith.constant 0 : index
    %7 = vector.load %arg4[%6, %c0_3, %c0_4] : memref<1x32x128xf32, #tpu.memory_space<vmem>>, vector<1x32x128xf32>
    %8 = vector.shape_cast %7 : vector<1x32x128xf32> to vector<32x128xf32>
    %9 = arith.index_cast %c0_i32_1 : i32 to index
    %c0_5 = arith.constant 0 : index
    %c0_6 = arith.constant 0 : index
    %10 = vector.load %arg5[%9, %c0_5, %c0_6] : memref<1x32x128xf32, #tpu.memory_space<vmem>>, vector<1x32x128xf32>
    %11 = vector.shape_cast %10 : vector<1x32x128xf32> to vector<32x128xf32>
    %c0_7 = arith.constant 0 : index
    %c0_8 = arith.constant 0 : index
    %12 = vector.load %arg8[%c0_7, %c0_8] : memref<32x128xf32, #tpu.memory_space<vmem>>, vector<32x128xf32>
    %13 = arith.mulf %8, %11 : vector<32x128xf32>
    %cst = arith.constant dense<0.000000e+00> : vector<128xf32>
    %14 = vector.multi_reduction <add>, %13, %cst [0] : vector<32x128xf32> to vector<128xf32>
    %15 = vector.shape_cast %14 : vector<128xf32> to vector<1x128xf32>
    %16 = arith.mulf %12, %8 : vector<32x128xf32>
    %cst_9 = arith.constant dense<0.000000e+00> : vector<128xf32>
    %17 = vector.multi_reduction <add>, %16, %cst_9 [0] : vector<32x128xf32> to vector<128xf32>
    %18 = vector.shape_cast %17 : vector<128xf32> to vector<1x128xf32>
    %19 = arith.addf %18, %5 : vector<1x128xf32>
    %20 = math.tanh %19 : vector<1x128xf32>
    %21 = vector.broadcast %20 : vector<1x128xf32> to vector<32x128xf32>
    %22 = arith.mulf %11, %21 : vector<32x128xf32>
    %23 = arith.addf %12, %22 : vector<32x128xf32>
    %c0_10 = arith.constant 0 : index
    %c0_11 = arith.constant 0 : index
    %24 = vector.load %arg8[%c0_10, %c0_11] : memref<32x128xf32, #tpu.memory_space<vmem>>, vector<32x128xf32>
    tpu.vector_store %arg8[%c0_10, %c0_11], %23 {strides = array<i32>} : memref<32x128xf32, #tpu.memory_space<vmem>>, vector<32x128xf32>,
    %c0_12 = arith.constant 0 : index
    %c0_13 = arith.constant 0 : index
    %25 = vector.load %arg9[%c0_12, %c0_13] : memref<1x128xf32, #tpu.memory_space<vmem>>, vector<1x128xf32>
    %26 = arith.mulf %20, %20 : vector<1x128xf32>
    %cst_14 = arith.constant 1.000000e+00 : f32
    %27 = vector.broadcast %cst_14 : f32 to vector<1x128xf32>
    %28 = arith.subf %27, %26 : vector<1x128xf32>
    %29 = arith.mulf %28, %15 : vector<1x128xf32>
    %cst_15 = arith.constant 1.000000e+00 : f32
    %30 = vector.broadcast %cst_15 : f32 to vector<1x128xf32>
    %31 = arith.addf %30, %29 : vector<1x128xf32>
    %32 = math.absf %31 : vector<1x128xf32>
    %33 = math.log %32 : vector<1x128xf32>
    %34 = arith.addf %25, %33 : vector<1x128xf32>
    %c0_16 = arith.constant 0 : index
    %c0_17 = arith.constant 0 : index
    %35 = vector.load %arg9[%c0_16, %c0_17] : memref<1x128xf32, #tpu.memory_space<vmem>>, vector<1x128xf32>
    tpu.vector_store %arg9[%c0_16, %c0_17], %34 {strides = array<i32>} : memref<1x128xf32, #tpu.memory_space<vmem>>, vector<1x128xf32>,
    %c1_i32 = arith.constant 1 : i32
    %c0_i32_18 = arith.constant 0 : i32
    %36 = arith.cmpi eq, %arg1, %c0_i32_18 : i32
    %37 = arith.extui %36 : i1 to i32
    %c0_i32_19 = arith.constant 0 : i32
    %38 = arith.cmpi ne, %37, %c0_i32_19 : i32
    scf.if %38 {
      %c0_20 = arith.constant 0 : index
      %c0_21 = arith.constant 0 : index
      %39 = vector.load %arg8[%c0_20, %c0_21] : memref<32x128xf32, #tpu.memory_space<vmem>>, vector<32x128xf32>
      %c0_22 = arith.constant 0 : index
      %c0_23 = arith.constant 0 : index
      %40 = vector.load %arg6[%c0_22, %c0_23] : memref<32x128xf32, #tpu.memory_space<vmem>>, vector<32x128xf32>
      tpu.vector_store %arg6[%c0_22, %c0_23], %39 {strides = array<i32>} : memref<32x128xf32, #tpu.memory_space<vmem>>, vector<32x128xf32>,
      %c0_24 = arith.constant 0 : index
      %c0_25 = arith.constant 0 : index
      %41 = vector.load %arg9[%c0_24, %c0_25] : memref<1x128xf32, #tpu.memory_space<vmem>>, vector<1x128xf32>
      %c0_26 = arith.constant 0 : index
      %c0_27 = arith.constant 0 : index
      %42 = vector.load %arg7[%c0_26, %c0_27] : memref<1x128xf32, #tpu.memory_space<vmem>>, vector<1x128xf32>
      tpu.vector_store %arg7[%c0_26, %c0_27], %41 {strides = array<i32>} : memref<1x128xf32, #tpu.memory_space<vmem>>, vector<1x128xf32>,
    } else {
    }
    return
  }
  func.func @transform_0(%arg0: i32, %arg1: i32) -> (i32, i32) {
    %c0_i32 = arith.constant 0 : i32
    %c0_i32_0 = arith.constant 0 : i32
    return %c0_i32, %arg0 : i32, i32
  }
  func.func @transform_1(%arg0: i32, %arg1: i32) -> (i32, i32, i32) {
    %c0_i32 = arith.constant 0 : i32
    %c0_i32_0 = arith.constant 0 : i32
    return %arg1, %c0_i32, %arg0 : i32, i32, i32
  }
  func.func @transform_2(%arg0: i32, %arg1: i32) -> (i32, i32, i32) {
    %c0_i32 = arith.constant 0 : i32
    %c0_i32_0 = arith.constant 0 : i32
    return %arg1, %c0_i32, %arg0 : i32, i32, i32
  }
  func.func @transform_3(%arg0: i32, %arg1: i32) -> (i32, i32, i32) {
    %c0_i32 = arith.constant 0 : i32
    %c0_i32_0 = arith.constant 0 : i32
    return %arg1, %c0_i32, %arg0 : i32, i32, i32
  }
  func.func @transform_4(%arg0: i32, %arg1: i32) -> (i32, i32) {
    %c0_i32 = arith.constant 0 : i32
    %c0_i32_0 = arith.constant 0 : i32
    return %c0_i32, %arg0 : i32, i32
  }
  func.func @transform_5(%arg0: i32, %arg1: i32) -> (i32, i32) {
    %c0_i32 = arith.constant 0 : i32
    %c0_i32_0 = arith.constant 0 : i32
    return %c0_i32, %arg0 : i32, i32
  }
}

</mosaic_0001>

<llo_original>
// kernel: tpu_custom_call.1
$region0: #{tpu_custom_call.1}
  #allocation0 [shape = 'u32[]', space=smem, size = 0x4, offset = 0x4, fixed_abs, tag = 'smem constant byte address 0x4 - core index']
  #allocation1 [shape = 'u32[144,128]{1,0:T(1,128)}', space=vmem, size = 0x12000, scoped, tag = 'internal scratch']
  #allocation2 [shape = 'f32[32,128]{1,0:T(8,128)}', space=vmem, size = 0x4000, scoped, tag = 'scratch operand']
  #allocation3 [shape = 'f32[1,128]{1,0:T(1,128)}', space=vmem, size = 0x200, scoped, tag = 'scratch operand']
  %s0 = inlined_call_operand.hbm [shape: f32[32,128], index: 0, kind: input, shape index: {}]
  %s1 = inlined_call_operand.vmem [shape: f32[1,1,128], index: 1, kind: input, shape index: {}]
  %s2 = inlined_call_operand.hbm [shape: f32[1,32,128], index: 2, kind: input, shape index: {}]
  %s3 = inlined_call_operand.hbm [shape: f32[1,32,128], index: 3, kind: input, shape index: {}]
  %s4 = inlined_call_operand.hbm [shape: f32[32,128], index: 4, kind: output, shape index: {0}]
  %s5 = inlined_call_operand.hbm [shape: f32[1,128], index: 5, kind: output, shape index: {1}]
  %6 = xla_tuple %s4, %s5
  %s7 = sld [smem:[#allocation0]]
  $region54: #{tpu_custom_call.1} parent=0
    _
  %s9 = ssub.s32 1, %s7
  %s10 = scalar_select 0, %s9, %s7
  $region1: #{tpu_custom_call.1} parent=0
    #allocation4 [shape = 'u8[16384]{0}', space=vmem, size = 0x4000, scoped, tag = 'input window, operand 0, single buffered']
    #allocation5 [shape = 's32[1]{0}', space=sflag, size = 0x4, scoped, tag = 'scoped memory for tpu_custom_call.1']
    #allocation6 [shape = 's32[1]{0}', space=sflag, size = 0x4, scoped, tag = 'scoped memory for tpu_custom_call.1']
    #allocation7 [shape = 'u8[16384]{0}', space=vmem, size = 0x4000, scoped, tag = 'input window, operand 2, single buffered']
    #allocation8 [shape = 's32[1]{0}', space=sflag, size = 0x4, scoped, tag = 'scoped memory for tpu_custom_call.1']
    #allocation9 [shape = 'u8[16384]{0}', space=vmem, size = 0x4000, scoped, tag = 'input window, operand 3, single buffered']
    #allocation10 [shape = 'u8[16384]{0}', space=vmem, size = 0x4000, scoped, tag = 'output window, operand 0, single buffered']
    #allocation11 [shape = 'u8[512]{0}', space=vmem, size = 0x400, scoped, tag = 'output window, operand 1, single buffered']
    #allocation12 [shape = 's32[1]{0}', space=sflag, size = 0x4, scoped, tag = 'scoped memory for tpu_custom_call.1']
    %11 = vsyncpa [#allocation5], 0
    %12 = vsyncpa [#allocation8], 0
    %13 = vsyncpa [#allocation6], 0
    %14 = vsyncpa [#allocation12], 0
    // Predicated region
    $region2: #{tpu_custom_call.1} parent=1 // pred_check
      _
    $region3: #{tpu_custom_call.1} parent=1 // pred_check_branch
      %16 = sbr.rel (0) target = $region5
    $region4: #{tpu_custom_call.1} parent=1 // pred_region
      %s18 = ssub.s32 512, 512
      %19 = vsyncadd [#allocation5], %s18
      %s20 = sshll.u32 [#allocation4], 4
      %s21 = int_to_ptr.vmem [resolvable:$true] %s20
      %26 = dma.hbm_to_vmem [thread:$0]  %s0, 512, %s21, [#allocation5], 128, 128, 8
    $region5: #{tpu_custom_call.1} parent=1 // pred_fallthru
      _
    // Predicated region
    $region6: #{tpu_custom_call.1} parent=1 // pred_check
      _
    $region7: #{tpu_custom_call.1} parent=1 // pred_check_branch
      %28 = sbr.rel (0) target = $region9
    $region8: #{tpu_custom_call.1} parent=1 // pred_region
      _
    $region9: #{tpu_custom_call.1} parent=1 // pred_fallthru
      _
    // Predicated region
    $region10: #{tpu_custom_call.1} parent=1 // pred_check
      _
    $region11: #{tpu_custom_call.1} parent=1 // pred_check_branch
      %30 = sbr.rel (0) target = $region13
    $region12: #{tpu_custom_call.1} parent=1 // pred_region
      %s32 = ssub.s32 512, 512
      %33 = vsyncadd [#allocation8], %s32
      %s34 = sshll.u32 [#allocation7], 4
      %s35 = int_to_ptr.vmem [resolvable:$true] %s34
      %40 = dma.hbm_to_vmem [thread:$0]  %s2, 512, %s35, [#allocation8], 128, 128, 8
    $region13: #{tpu_custom_call.1} parent=1 // pred_fallthru
      _
    // Predicated region
    $region14: #{tpu_custom_call.1} parent=1 // pred_check
      _
    $region15: #{tpu_custom_call.1} parent=1 // pred_check_branch
      %42 = sbr.rel (0) target = $region17
    $region16: #{tpu_custom_call.1} parent=1 // pred_region
      %s44 = ssub.s32 512, 512
      %45 = vsyncadd [#allocation8], %s44
      %s46 = sshll.u32 [#allocation9], 4
      %s47 = int_to_ptr.vmem [resolvable:$true] %s46
      %52 = dma.hbm_to_vmem [thread:$0]  %s3, 512, %s47, [#allocation8], 128, 128, 8
    $region17: #{tpu_custom_call.1} parent=1 // pred_fallthru
      _
    // Predicated region
    $region18: #{tpu_custom_call.1} parent=1 // pred_check
      _
    $region19: #{tpu_custom_call.1} parent=1 // pred_check_branch
      %54 = sbr.rel (0) target = $region21
    $region20: #{tpu_custom_call.1} parent=1 // pred_region
      %55 = dma.done [#allocation5], 512
    $region21: #{tpu_custom_call.1} parent=1 // pred_fallthru
      _
    // Predicated region
    $region22: #{tpu_custom_call.1} parent=1 // pred_check
      _
    $region23: #{tpu_custom_call.1} parent=1 // pred_check_branch
      %57 = sbr.rel (0) target = $region25
    $region24: #{tpu_custom_call.1} parent=1 // pred_region
      %58 = dma.done [#allocation8], 512
    $region25: #{tpu_custom_call.1} parent=1 // pred_fallthru
      _
    // Predicated region
    $region26: #{tpu_custom_call.1} parent=1 // pred_check
      _
    $region27: #{tpu_custom_call.1} parent=1 // pred_check_branch
      %60 = sbr.rel (0) target = $region29
    $region28: #{tpu_custom_call.1} parent=1 // pred_region
      %61 = dma.done [#allocation8], 512
    $region29: #{tpu_custom_call.1} parent=1 // pred_fallthru
      _
    %p62 = scmp.eq.s32.totalorder 0, 0
    // Predicated region
    $region30: #{tpu_custom_call.1} parent=1 // pred_check
      %p63 = pneg %p62
    $region31: #{tpu_custom_call.1} parent=1 // pred_check_branch
      %65 = sbr.rel (%p63) target = $region33
    $region32: #{tpu_custom_call.1} parent=1 // pred_region
      %v66 = vld [vmem:[#allocation4] sm:$0xff]
      %v67 = vld [vmem:[#allocation4 + $0x8] sm:$0xff]
      %v68 = vld [vmem:[#allocation4 + $0x10] sm:$0xff]
      %v69 = vld [vmem:[#allocation4 + $0x18] sm:$0xff]
      %70 = vst [vmem:[#allocation2] sm:$0xff] %v66
      %71 = vst [vmem:[#allocation2 + $0x8] sm:$0xff] %v67
      %72 = vst [vmem:[#allocation2 + $0x10] sm:$0xff] %v68
      %73 = vst [vmem:[#allocation2 + $0x18] sm:$0xff] %v69
      %74 = vst [vmem:[#allocation3] sm:$0x1] 0.0
    $region33: #{tpu_custom_call.1} parent=1 // pred_fallthru
      _
    %v75 = vld [vmem:[%s1] sm:$0x1]
    %v76 = vld [vmem:[#allocation7] sm:$0xff]
    %v77 = vld [vmem:[#allocation7 + $0x8] sm:$0xff]
    %v78 = vld [vmem:[#allocation7 + $0x10] sm:$0xff]
    %v79 = vld [vmem:[#allocation7 + $0x18] sm:$0xff]
    %v80 = vld [vmem:[#allocation9] sm:$0xff]
    %v81 = vld [vmem:[#allocation9 + $0x8] sm:$0xff]
    %v82 = vld [vmem:[#allocation9 + $0x10] sm:$0xff]
    %v83 = vld [vmem:[#allocation9 + $0x18] sm:$0xff]
    %v84 = vld [vmem:[#allocation2] sm:$0xff]
    %v85 = vld [vmem:[#allocation2 + $0x8] sm:$0xff]
    %v86 = vld [vmem:[#allocation2 + $0x10] sm:$0xff]
    %v87 = vld [vmem:[#allocation2 + $0x18] sm:$0xff]
    %v88 = vmul.f32 %v76, %v80
    %v89 = vmul.f32 %v77, %v81
    %v90 = vmul.f32 %v78, %v82
    %v91 = vmul.f32 %v79, %v83
    %v92 = vadd.f32 %v88, %v89
    %v93 = vadd.f32 %v92, %v90
    %v94 = vadd.f32 %v93, %v91
    %v95 = vrot.slane %v94, 4
    %v96 = vadd.f32 %v94, %v95
    %v97 = vrot.slane %v96, 2
    %v98 = vadd.f32 %v96, %v97
    %v99 = vrot.slane %v98, 1
    %v100 = vadd.f32 %v98, %v99
    %v101 = vmul.f32 %v84, %v76
    %v102 = vmul.f32 %v85, %v77
    %v103 = vmul.f32 %v86, %v78
    %v104 = vmul.f32 %v87, %v79
    %v105 = vadd.f32 %v101, %v102
    %v106 = vadd.f32 %v105, %v103
    %v107 = vadd.f32 %v106, %v104
    %v108 = vrot.slane %v107, 4
    %v109 = vadd.f32 %v107, %v108
    %v110 = vrot.slane %v109, 2
    %v111 = vadd.f32 %v109, %v110
    %v112 = vrot.slane %v111, 1
    %v113 = vadd.f32 %v111, %v112
    %v114 = vadd.f32 %v113, %v75
    %v115 = vtanh.pop %v114
    %v116 = vlaneseq
    %v117 = vshrl.u32 %v116, 7
    %v118 = vsub.s32 0, %v117
    %v119 = vrot.slane %v115, %v118
    %v120 = vmul.f32 %v80, %v119
    %v121 = vmul.f32 %v81, %v119
    %v122 = vmul.f32 %v82, %v119
    %v123 = vmul.f32 %v83, %v119
    %v124 = vadd.f32 %v84, %v120
    %v125 = vadd.f32 %v85, %v121
    %v126 = vadd.f32 %v86, %v122
    %v127 = vadd.f32 %v87, %v123
    %128 = vst [vmem:[#allocation2] sm:$0xff] %v124
    %129 = vst [vmem:[#allocation2 + $0x8] sm:$0xff] %v125
    %130 = vst [vmem:[#allocation2 + $0x10] sm:$0xff] %v126
    %131 = vst [vmem:[#allocation2 + $0x18] sm:$0xff] %v127
    %v132 = vld [vmem:[#allocation3] sm:$0x1]
    %v133 = vmul.f32 %v115, %v115
    %v134 = vsub.f32 1.0, %v133
    %v135 = vmul.f32 %v134, %v100
    %v136 = vadd.f32 %v135, 1.0
    %v137 = vand.u32 2147483647, %v136
    %v138 = vlog2.pop %v137
    %v139 = vmul.f32 %v138, 0.6931472
    %v140 = vadd.f32 %v132, %v139
    %141 = vst [vmem:[#allocation3] sm:$0x1] %v140
    // Predicated region
    $region34: #{tpu_custom_call.1} parent=1 // pred_check
      %p142 = pneg %p62
    $region35: #{tpu_custom_call.1} parent=1 // pred_check_branch
      %144 = sbr.rel (%p142) target = $region37
    $region36: #{tpu_custom_call.1} parent=1 // pred_region
      %v145 = vld [vmem:[#allocation2] sm:$0xff]
      %v146 = vld [vmem:[#allocation2 + $0x8] sm:$0xff]
      %v147 = vld [vmem:[#allocation2 + $0x10] sm:$0xff]
      %v148 = vld [vmem:[#allocation2 + $0x18] sm:$0xff]
      %149 = vst [vmem:[#allocation10] sm:$0xff] %v145
      %150 = vst [vmem:[#allocation10 + $0x8] sm:$0xff] %v146
      %151 = vst [vmem:[#allocation10 + $0x10] sm:$0xff] %v147
      %152 = vst [vmem:[#allocation10 + $0x18] sm:$0xff] %v148
      %v153 = vld [vmem:[#allocation3] sm:$0x1]
      %154 = vst [vmem:[#allocation11] sm:$0x1] %v153
    $region37: #{tpu_custom_call.1} parent=1 // pred_fallthru
      _
    // Predicated region
    $region38: #{tpu_custom_call.1} parent=1 // pred_check
      _
    $region39: #{tpu_custom_call.1} parent=1 // pred_check_branch
      %156 = sbr.rel (0) target = $region41
    $region40: #{tpu_custom_call.1} parent=1 // pred_region
      %s158 = ssub.s32 512, 512
      %159 = vsyncadd [#allocation6], %s158
      %s160 = sshll.u32 [#allocation10], 4
      %s161 = int_to_ptr.vmem [resolvable:$true] %s160
      %166 = dma.vmem_to_hbm [thread:$0]  %s161, 512, %s4, [#allocation6], 128, 128, 8
    $region41: #{tpu_custom_call.1} parent=1 // pred_fallthru
      _
    // Predicated region
    $region42: #{tpu_custom_call.1} parent=1 // pred_check
      _
    $region43: #{tpu_custom_call.1} parent=1 // pred_check_branch
      %168 = sbr.rel (0) target = $region45
    $region44: #{tpu_custom_call.1} parent=1 // pred_region
      %s170 = ssub.s32 16, 16
      %171 = vsyncadd [#allocation12], %s170
      %s173 = sshll.u32 [#allocation11], 4
      %s174 = int_to_ptr.vmem [resolvable:$true] %s173
      %176 = dma.vmem_to_hbm [thread:$0]  %s174, 16, %s5, [#allocation12]
    $region45: #{tpu_custom_call.1} parent=1 // pred_fallthru
      _
    // Predicated region
    $region46: #{tpu_custom_call.1} parent=1 // pred_check
      _
    $region47: #{tpu_custom_call.1} parent=1 // pred_check_branch
      %178 = sbr.rel (0) target = $region49
    $region48: #{tpu_custom_call.1} parent=1 // pred_region
      %179 = dma.done [#allocation6], 512
    $region49: #{tpu_custom_call.1} parent=1 // pred_fallthru
      _
    // Predicated region
    $region50: #{tpu_custom_call.1} parent=1 // pred_check
      _
    $region51: #{tpu_custom_call.1} parent=1 // pred_check_branch
      %181 = sbr.rel (0) target = $region53
    $region52: #{tpu_custom_call.1} parent=1 // pred_region
      %182 = dma.done [#allocation12], 16
    $region53: #{tpu_custom_call.1} parent=1 // pred_fallthru
      _
    %183 = vsyncpa [#allocation5], 1
    %184 = vsyncpa [#allocation8], 1
    %185 = vsyncpa [#allocation6], 1
    %186 = vsyncpa [#allocation12], 1

</llo_original>
